<compile_context>
chip_gen: v7x
topology: tpu7x:2x2x1
jax: 0.10.0
libtpu: 0.0.40
codegen_flags: <defaults>
</compile_context>

<pallas_src>
import functools
import math

import jax
import jax.numpy as jnp
from jax import lax
from jax.experimental import pallas as pl
from jax.experimental.pallas import tpu as pltpu

LN_EPS = 1e-5                      # PyTorch nn.LayerNorm default
_INV_SQRT2 = 1.0 / math.sqrt(2.0)  # exact (erf) GELU, PyTorch default


def _cdiv(a, b):
    return -(-a // b)


def _round_up(n, m):
    return _cdiv(n, m) * m


def _physical_vmem_bytes():
    """Per-core physical VMEM; conservative 64 MiB fallback (fits every gen)."""
    try:
        info = pltpu.get_tpu_info()
        v = getattr(info, "vmem_capacity_bytes", None)
        if v:
            return int(v)
    except Exception:
        pass
    return 64 << 20


def _row_tile(M, grid_rows):
    """Balanced row tile for `grid_rows` tiles; returns (tm, actual_grid_rows)."""
    if grid_rows <= 1:
        return M, 1
    tm = _round_up(_cdiv(M, grid_rows), 8)
    return tm, _cdiv(M, tm)


def _choose_tn(out_p, target):
    """Largest multiple of 128 that divides out_p and is <= target."""
    best = 128
    d = 128
    limit = min(out_p, max(128, target))
    while d <= limit:
        if out_p % d == 0:
            best = d
        d += 128
    return best


def _layernorm(v, g, b, true_dim):
    """LayerNorm over the last (possibly lane-padded) axis; statistics use only the
    first `true_dim` lanes.  Padded lanes of g/b are zero, so padded outputs are 0."""
    d_pad = v.shape[-1]
    inv_n = 1.0 / float(true_dim)
    mu = jnp.sum(v, axis=-1, keepdims=True) * inv_n       # padded lanes of v are 0
    diff = v - mu
    if d_pad != true_dim:
        mask = lax.broadcasted_iota(jnp.int32, v.shape, 1) < true_dim
        diff = jnp.where(mask, diff, 0.0)
    var = jnp.sum(diff * diff, axis=-1, keepdims=True) * inv_n
    return diff * lax.rsqrt(var + LN_EPS) * g + b


# ----------------------------------------------------------------------------
# Path A: all weights resident in VMEM, 1-D row-parallel grid.
# ----------------------------------------------------------------------------
def _mlpproj_kernel_resident(x_ref, g1_ref, bt1_ref, w1_ref, b1_ref,
                             w2_ref, b2_ref, g2_ref, bt2_ref, o_ref,
                             *, in_dim, out_dim, compute_dtype):
    x = x_ref[...].astype(jnp.float32)                                # (tm, in_p)
    xn = _layernorm(x, g1_ref[...], bt1_ref[...], in_dim)

    h = jnp.dot(xn.astype(compute_dtype), w1_ref[...],
                preferred_element_type=jnp.float32) + b1_ref[...]
    h = 0.5 * h * (1.0 + lax.erf(h * _INV_SQRT2))                     # exact GELU

    y = jnp.dot(h.astype(compute_dtype), w2_ref[...],
                preferred_element_type=jnp.float32) + b2_ref[...]

    o_ref[...] = _layernorm(y, g2_ref[...], bt2_ref[...], out_dim).astype(o_ref.dtype)


# ----------------------------------------------------------------------------
# Path B: W2 streamed over a second grid axis (large projector dims / small VMEM).
# h = GELU(LN1(x) @ W1 + b1) is computed once per row tile (j == 0) and cached in
# VMEM scratch; y slabs are accumulated in f32 scratch and LN2 is applied once the
# full out row is assembled (j == last).
# ----------------------------------------------------------------------------
def _mlpproj_kernel_stream(x_ref, g1_ref, bt1_ref, w1_ref, b1_ref,
                           w2_ref, b2_ref, g2_ref, bt2_ref, o_ref,
                           h_scr, y_scr,
                           *, in_dim, out_dim, nj, compute_dtype):
    j = pl.program_id(1)

    @pl.when(j == 0)
    def _():
        x = x_ref[...].astype(jnp.float32)
        xn = _layernorm(x, g1_ref[...], bt1_ref[...], in_dim)
        h = jnp.dot(xn.astype(compute_dtype), w1_ref[...],
                    preferred_element_type=jnp.float32) + b1_ref[...]
        h = 0.5 * h * (1.0 + lax.erf(h * _INV_SQRT2))
        h_scr[...] = h.astype(compute_dtype)

    # GEMM2 against the current out_dim slab of W2; slab stored by (leading) index j.
    y_scr[j] = (jnp.dot(h_scr[...], w2_ref[...],
                        preferred_element_type=jnp.float32) + b2_ref[...])

    @pl.when(j == nj - 1)
    def _():
        y = jnp.concatenate([y_scr[s] for s in range(nj)], axis=-1)   # (tm, out_p)
        o_ref[...] = _layernorm(y, g2_ref[...], bt2_ref[...], out_dim).astype(o_ref.dtype)


# ----------------------------------------------------------------------------
# Wrapper
# ----------------------------------------------------------------------------
def mlp_proj(image_embeds, params, *, compute_dtype=jnp.bfloat16,
             force_stream_w2=False, tn=None):
    """image_embeds: (B, S, in_dim). params: dict of f32 weights (see init_params)."""
    B, S, in_dim = image_embeds.shape
    out_dim = params["w2"].shape[1]
    M = B * S
    out_dtype = image_embeds.dtype

    in_p = _round_up(in_dim, 128)
    out_p = _round_up(out_dim, 128)

    # Flatten rows; pad the feature (lane) axis only if it isn't already 128-aligned.
    x2d = image_embeds.reshape(M, in_dim)
    if in_p != in_dim:
        x2d = jnp.pad(x2d, ((0, 0), (0, in_p - in_dim)))

    def pad2(a, r, c):
        if a.shape == (r, c):
            return a
        return jnp.pad(a, ((0, r - a.shape[0]), (0, c - a.shape[1])))

    g1 = pad2(params["ln1_g"], 1, in_p)
    bt1 = pad2(params["ln1_b"], 1, in_p)
    w1 = pad2(params["w1"], in_p, in_p).astype(compute_dtype)
    b1 = pad2(params["b1"], 1, in_p)
    w2 = pad2(params["w2"], in_p, out_p).astype(compute_dtype)
    b2 = pad2(params["b2"], 1, out_p)
    g2 = pad2(params["ln2_g"], 1, out_p)
    bt2 = pad2(params["ln2_b"], 1, out_p)

    x_bytes = x2d.dtype.itemsize
    o_bytes = jnp.dtype(out_dtype).itemsize
    w_bytes = jnp.dtype(compute_dtype).itemsize

    # --- generation-aware sizing ------------------------------------------------
    phys = _physical_vmem_bytes()
    budget = max(int(phys * 0.85) - (2 << 20), 16 << 20)
    small_vmem = phys <= (64 << 20)          # v7x-like: 64 MiB / TC, 2 TCs per chip
    tm_target = 256 if small_vmem else 512
    vec_bytes = (3 * in_p + 3 * out_p) * 4

    def fp_resident(t):
        return ((in_p * in_p + in_p * out_p) * w_bytes + vec_bytes
                + 2 * t * (in_p * x_bytes + out_p * o_bytes)     # double-buffered io
                + t * (3 * in_p + 2 * out_p) * 4)                # f32 temporaries

    def fp_stream(t, n):
        return (in_p * in_p * w_bytes + vec_bytes                 # resident W1 + vecs
                + 2 * t * in_p * x_bytes + 2 * in_p * n * w_bytes # x tile + W2 slab
                + 2 * t * out_p * o_bytes + 2 * n * 4             # out tile + b2 slab
                + t * in_p * w_bytes + t * out_p * 4              # h / y scratch
                + t * (3 * in_p + 2 * n) * 4)                     # f32 temporaries

    grid_rows = _cdiv(M, tm_target)
    if small_vmem and grid_rows == 1 and M >= 16:
        grid_rows = 2                        # keep both TensorCores busy on v7x
    tm, grid_rows = _row_tile(M, grid_rows)

    stream = bool(force_stream_w2)
    if not stream:
        while fp_resident(tm) > budget and tm > 8:
            tm, grid_rows = _row_tile(M, _cdiv(M, max(8, tm // 2)))
        stream = fp_resident(tm) > budget    # weights don't fit residency -> stream W2

    if stream:
        tn_target = tn if tn is not None else (256 if small_vmem else 512)
        tn_eff = _choose_tn(out_p, tn_target)
        while fp_stream(tm, tn_eff) > budget and tm > 8:
            tm, grid_rows = _row_tile(M, _cdiv(M, max(8, tm // 2)))
        while fp_stream(tm, tn_eff) > budget and tn_eff > 128:
            tn_eff = _choose_tn(out_p, tn_eff - 128)
        # TODO(synk): if W1 alone still exceeds VMEM, also stream W1 over a K grid axis.
        nj = out_p // tn_eff
        footprint = fp_stream(tm, tn_eff)
    else:
        footprint = fp_resident(tm)

    vmem_limit = int(min(max(int(footprint * 1.3) + (4 << 20), 32 << 20),
                         int(phys * 0.9)))

    cost = pl.CostEstimate(
        flops=2 * M * in_p * (in_p + out_p),
        transcendentals=M * in_p,
        bytes_accessed=(M * in_p * x_bytes + M * out_p * o_bytes
                        + (in_p * in_p + in_p * out_p) * w_bytes),
    )

    resident = pl.BlockSpec(memory_space=pltpu.MemorySpace.VMEM)

    if not stream:
        kernel = functools.partial(_mlpproj_kernel_resident, in_dim=in_dim,
                                   out_dim=out_dim, compute_dtype=compute_dtype)
        out = pl.pallas_call(
            kernel,
            out_shape=jax.ShapeDtypeStruct((M, out_p), out_dtype),
            grid=(grid_rows,),
            in_specs=[
                pl.BlockSpec((tm, in_p), lambda i: (i, 0)),   # x row tile (native dtype)
                resident, resident,                            # LN1 gamma/beta
                resident, resident,                            # W1 (bf16), b1
                resident, resident,                            # W2 (bf16), b2
                resident, resident,                            # LN2 gamma/beta
            ],
            out_specs=pl.BlockSpec((tm, out_p), lambda i: (i, 0)),
            compiler_params=pltpu.CompilerParams(
                dimension_semantics=("parallel",),
                vmem_limit_bytes=vmem_limit),
            cost_estimate=cost,
        )(x2d, g1, bt1, w1, b1, w2, b2, g2, bt2)
    else:
        kernel = functools.partial(_mlpproj_kernel_stream, in_dim=in_dim,
                                   out_dim=out_dim, nj=nj,
                                   compute_dtype=compute_dtype)
        out = pl.pallas_call(
            kernel,
            out_shape=jax.ShapeDtypeStruct((M, out_p), out_dtype),
            grid=(grid_rows, nj),
            in_specs=[
                pl.BlockSpec((tm, in_p), lambda i, j: (i, 0)),       # x row tile
                resident, resident,                                   # LN1 gamma/beta
                resident, resident,                                   # W1 (bf16), b1
                pl.BlockSpec((in_p, tn_eff), lambda i, j: (0, j)),    # W2 slab (streamed)
                pl.BlockSpec((1, tn_eff), lambda i, j: (0, j)),       # b2 slab
                resident, resident,                                   # LN2 gamma/beta
            ],
            out_specs=pl.BlockSpec((tm, out_p), lambda i, j: (i, 0)), # resident over j
            scratch_shapes=[pltpu.VMEM((tm, in_p), compute_dtype),    # cached h
                            pltpu.VMEM((nj, tm, tn_eff), jnp.float32)],  # y slabs
            compiler_params=pltpu.CompilerParams(
                dimension_semantics=("parallel", "arbitrary"),
                vmem_limit_bytes=vmem_limit),
            cost_estimate=cost,
        )(x2d, g1, bt1, w1, b1, w2, b2, g2, bt2)

    if out_p != out_dim:
        out = out[:, :out_dim]
    return out.reshape(B, S, out_dim)


# ----------------------------------------------------------------------------
# Parameters / reference
# ----------------------------------------------------------------------------
def init_params(key, in_dim, out_dim):
    k1, k2, k3, k4 = jax.random.split(key, 4)
    s1 = 1.0 / math.sqrt(in_dim)
    return {
        "ln1_g": jnp.ones((1, in_dim), jnp.float32),
        "ln1_b": jnp.zeros((1, in_dim), jnp.float32),
        # Linear weights stored as (in, out) so the kernel computes x @ W + b.
        "w1": jax.random.uniform(k1, (in_dim, in_dim), jnp.float32, -s1, s1),
        "b1": jax.random.uniform(k2, (1, in_dim), jnp.float32, -s1, s1),
        "w2": jax.random.uniform(k3, (in_dim, out_dim), jnp.float32, -s1, s1),
        "b2": jax.random.uniform(k4, (1, out_dim), jnp.float32, -s1, s1),
        "ln2_g": jnp.ones((1, out_dim), jnp.float32),
        "ln2_b": jnp.zeros((1, out_dim), jnp.float32),
    }


def mlp_proj_reference(x, p):
    def ln(v, g, b):
        mu = jnp.mean(v, -1, keepdims=True)
        var = jnp.mean((v - mu) ** 2, -1, keepdims=True)
        return (v - mu) * lax.rsqrt(var + LN_EPS) * g + b

    h = ln(x, p["ln1_g"], p["ln1_b"]) @ p["w1"] + p["b1"]
    h = 0.5 * h * (1.0 + lax.erf(h * _INV_SQRT2))
    y = h @ p["w2"] + p["b2"]
    return ln(y, p["ln2_g"], p["ln2_b"])


if __name__ == "__main__":
    key = jax.random.PRNGKey(0)
    kx1, kp1, kx2, kp2 = jax.random.split(key, 4)

    # --- Test 1: default (resident-weights) path --------------------------------
    B, S, IN_DIM, OUT_DIM = 2, 8, 32, 64
    x = jax.random.normal(kx1, (B, S, IN_DIM), jnp.float32)
    params = init_params(kp1, IN_DIM, OUT_DIM)
    out = jax.block_until_ready(mlp_proj(x, params))
    ref = mlp_proj_reference(x, params)
    assert out.shape == (B, S, OUT_DIM)
    # bf16 matmul operands with f32 accumulation -> ~1e-2-level agreement vs f32 ref.
    assert jnp.allclose(out, ref, atol=5e-2, rtol=5e-2), "resident path mismatch"

    # --- Test 2: streamed-W2 fallback path (forced), exercises the 2-D grid -----
    B2, S2, IN2, OUT2 = 2, 10, 128, 256
    x2 = jax.random.normal(kx2, (B2, S2, IN2), jnp.float32)
    params2 = init_params(kp2, IN2, OUT2)
    out2 = jax.block_until_ready(mlp_proj(x2, params2, force_stream_w2=True, tn=128))
    ref2 = mlp_proj_reference(x2, params2)
    assert out2.shape == (B2, S2, OUT2)
    assert jnp.allclose(out2, ref2, atol=5e-2, rtol=5e-2), "streamed path mismatch"

    print("KERNEL_OK")
</pallas_src>

<mosaic_0001>
module attributes {stable_mosaic.version = 11 : i64} {
  func.func @_mlpproj_kernel_resident(%arg0: i32, %arg1: memref<8x128xf32, #tpu.memory_space<vmem>>, %arg2: memref<1x128xf32, #tpu.memory_space<vmem>>, %arg3: memref<1x128xf32, #tpu.memory_space<vmem>>, %arg4: memref<128x128xbf16, #tpu.memory_space<vmem>>, %arg5: memref<1x128xf32, #tpu.memory_space<vmem>>, %arg6: memref<128x128xbf16, #tpu.memory_space<vmem>>, %arg7: memref<1x128xf32, #tpu.memory_space<vmem>>, %arg8: memref<1x128xf32, #tpu.memory_space<vmem>>, %arg9: memref<1x128xf32, #tpu.memory_space<vmem>>, %arg10: memref<8x128xf32, #tpu.memory_space<vmem>>) attributes {dimension_semantics = [#tpu.dimension_semantics<parallel>], iteration_bounds = array<i64: 2>, scalar_prefetch = 0 : i64, scratch_operands = 0 : i64, tpu.core_type = #tpu.core_type<tc>, window_params = [{transform_indices = @transform_0, window_bounds = array<i64: 8, 128>}, {pipeline_mode = #tpu.pipeline_mode<synchronous>, transform_indices = @transform_1, window_bounds = array<i64: 1, 128>}, {pipeline_mode = #tpu.pipeline_mode<synchronous>, transform_indices = @transform_2, window_bounds = array<i64: 1, 128>}, {pipeline_mode = #tpu.pipeline_mode<synchronous>, transform_indices = @transform_3, window_bounds = array<i64: 128, 128>}, {pipeline_mode = #tpu.pipeline_mode<synchronous>, transform_indices = @transform_4, window_bounds = array<i64: 1, 128>}, {pipeline_mode = #tpu.pipeline_mode<synchronous>, transform_indices = @transform_5, window_bounds = array<i64: 128, 128>}, {pipeline_mode = #tpu.pipeline_mode<synchronous>, transform_indices = @transform_6, window_bounds = array<i64: 1, 128>}, {pipeline_mode = #tpu.pipeline_mode<synchronous>, transform_indices = @transform_7, window_bounds = array<i64: 1, 128>}, {pipeline_mode = #tpu.pipeline_mode<synchronous>, transform_indices = @transform_8, window_bounds = array<i64: 1, 128>}, {transform_indices = @transform_9, window_bounds = array<i64: 8, 128>}]} {
    %c0 = arith.constant 0 : index
    %c0_0 = arith.constant 0 : index
    %0 = vector.load %arg1[%c0, %c0_0] : memref<8x128xf32, #tpu.memory_space<vmem>>, vector<8x128xf32>
    %c0_1 = arith.constant 0 : index
    %c0_2 = arith.constant 0 : index
    %1 = vector.load %arg2[%c0_1, %c0_2] : memref<1x128xf32, #tpu.memory_space<vmem>>, vector<1x128xf32>
    %c0_3 = arith.constant 0 : index
    %c0_4 = arith.constant 0 : index
    %2 = vector.load %arg3[%c0_3, %c0_4] : memref<1x128xf32, #tpu.memory_space<vmem>>, vector<1x128xf32>
    %cst = arith.constant dense<0.000000e+00> : vector<8xf32>
    %3 = vector.multi_reduction <add>, %0, %cst [1] : vector<8x128xf32> to vector<8xf32>
    %4 = vector.shape_cast %3 : vector<8xf32> to vector<8x1xf32>
    %cst_5 = arith.constant 3.125000e-02 : f32
    %5 = vector.broadcast %cst_5 : f32 to vector<8x1xf32>
    %6 = arith.mulf %4, %5 : vector<8x1xf32>
    %7 = vector.broadcast %6 : vector<8x1xf32> to vector<8x128xf32>
    %8 = arith.subf %0, %7 : vector<8x128xf32>
    %9 = tpu.iota {dimensions = array<i32: 1>} : vector<8x128xi32>
    %c32_i32 = arith.constant 32 : i32
    %10 = vector.broadcast %c32_i32 : i32 to vector<8x128xi32>
    %11 = arith.cmpi slt, %9, %10 : vector<8x128xi32>
    %cst_6 = arith.constant 0.000000e+00 : f32
    %12 = vector.broadcast %cst_6 : f32 to vector<8x128xf32>
    %13 = arith.select %11, %8, %12 : vector<8x128xi1>, vector<8x128xf32>
    %14 = arith.mulf %13, %13 : vector<8x128xf32>
    %cst_7 = arith.constant dense<0.000000e+00> : vector<8xf32>
    %15 = vector.multi_reduction <add>, %14, %cst_7 [1] : vector<8x128xf32> to vector<8xf32>
    %16 = vector.shape_cast %15 : vector<8xf32> to vector<8x1xf32>
    %cst_8 = arith.constant 3.125000e-02 : f32
    %17 = vector.broadcast %cst_8 : f32 to vector<8x1xf32>
    %18 = arith.mulf %16, %17 : vector<8x1xf32>
    %cst_9 = arith.constant 9.99999974E-6 : f32
    %19 = vector.broadcast %cst_9 : f32 to vector<8x1xf32>
    %20 = arith.addf %18, %19 : vector<8x1xf32>
    %21 = math.rsqrt %20 : vector<8x1xf32>
    %22 = vector.broadcast %21 : vector<8x1xf32> to vector<8x128xf32>
    %23 = arith.mulf %13, %22 : vector<8x128xf32>
    %24 = vector.broadcast %1 : vector<1x128xf32> to vector<8x128xf32>
    %25 = arith.mulf %23, %24 : vector<8x128xf32>
    %26 = vector.broadcast %2 : vector<1x128xf32> to vector<8x128xf32>
    %27 = arith.addf %25, %26 : vector<8x128xf32>
    %28 = arith.truncf %27 : vector<8x128xf32> to vector<8x128xbf16>
    %c0_10 = arith.constant 0 : index
    %c0_11 = arith.constant 0 : index
    %29 = vector.load %arg4[%c0_10, %c0_11] : memref<128x128xbf16, #tpu.memory_space<vmem>>, vector<128x128xbf16>
    %cst_12 = arith.constant dense<0.000000e+00> : vector<8x128xf32>
    %30 = tpu.matmul %28, %29, %cst_12 {dimension_numbers = #tpu.dot_dimension_numbers<[1], [0], [0], [1], [0, 0, 1, 1], [], []>} : vector<8x128xbf16>, vector<128x128xbf16>, vector<8x128xf32> -> vector<8x128xf32>
    %c0_13 = arith.constant 0 : index
    %c0_14 = arith.constant 0 : index
    %31 = vector.load %arg5[%c0_13, %c0_14] : memref<1x128xf32, #tpu.memory_space<vmem>>, vector<1x128xf32>
    %32 = vector.broadcast %31 : vector<1x128xf32> to vector<8x128xf32>
    %33 = arith.addf %30, %32 : vector<8x128xf32>
    %cst_15 = arith.constant 5.000000e-01 : f32
    %34 = vector.broadcast %cst_15 : f32 to vector<8x128xf32>
    %35 = arith.mulf %34, %33 : vector<8x128xf32>
    %cst_16 = arith.constant 0.707106769 : f32
    %36 = vector.broadcast %cst_16 : f32 to vector<8x128xf32>
    %37 = arith.mulf %33, %36 : vector<8x128xf32>
    %38 = math.erf %37 : vector<8x128xf32>
    %cst_17 = arith.constant 1.000000e+00 : f32
    %39 = vector.broadcast %cst_17 : f32 to vector<8x128xf32>
    %40 = arith.addf %39, %38 : vector<8x128xf32>
    %41 = arith.mulf %35, %40 : vector<8x128xf32>
    %42 = arith.truncf %41 : vector<8x128xf32> to vector<8x128xbf16>
    %c0_18 = arith.constant 0 : index
    %c0_19 = arith.constant 0 : index
    %43 = vector.load %arg6[%c0_18, %c0_19] : memref<128x128xbf16, #tpu.memory_space<vmem>>, vector<128x128xbf16>
    %cst_20 = arith.constant dense<0.000000e+00> : vector<8x128xf32>
    %44 = tpu.matmul %42, %43, %cst_20 {dimension_numbers = #tpu.dot_dimension_numbers<[1], [0], [0], [1], [0, 0, 1, 1], [], []>} : vector<8x128xbf16>, vector<128x128xbf16>, vector<8x128xf32> -> vector<8x128xf32>
    %c0_21 = arith.constant 0 : index
    %c0_22 = arith.constant 0 : index
    %45 = vector.load %arg7[%c0_21, %c0_22] : memref<1x128xf32, #tpu.memory_space<vmem>>, vector<1x128xf32>
    %46 = vector.broadcast %45 : vector<1x128xf32> to vector<8x128xf32>
    %47 = arith.addf %44, %46 : vector<8x128xf32>
    %c0_23 = arith.constant 0 : index
    %c0_24 = arith.constant 0 : index
    %48 = vector.load %arg8[%c0_23, %c0_24] : memref<1x128xf32, #tpu.memory_space<vmem>>, vector<1x128xf32>
    %c0_25 = arith.constant 0 : index
    %c0_26 = arith.constant 0 : index
    %49 = vector.load %arg9[%c0_25, %c0_26] : memref<1x128xf32, #tpu.memory_space<vmem>>, vector<1x128xf32>
    %cst_27 = arith.constant dense<0.000000e+00> : vector<8xf32>
    %50 = vector.multi_reduction <add>, %47, %cst_27 [1] : vector<8x128xf32> to vector<8xf32>
    %51 = vector.shape_cast %50 : vector<8xf32> to vector<8x1xf32>
    %cst_28 = arith.constant 1.562500e-02 : f32
    %52 = vector.broadcast %cst_28 : f32 to vector<8x1xf32>
    %53 = arith.mulf %51, %52 : vector<8x1xf32>
    %54 = vector.broadcast %53 : vector<8x1xf32> to vector<8x128xf32>
    %55 = arith.subf %47, %54 : vector<8x128xf32>
    %56 = tpu.iota {dimensions = array<i32: 1>} : vector<8x128xi32>
    %c64_i32 = arith.constant 64 : i32
    %57 = vector.broadcast %c64_i32 : i32 to vector<8x128xi32>
    %58 = arith.cmpi slt, %56, %57 : vector<8x128xi32>
    %cst_29 = arith.constant 0.000000e+00 : f32
    %59 = vector.broadcast %cst_29 : f32 to vector<8x128xf32>
    %60 = arith.select %58, %55, %59 : vector<8x128xi1>, vector<8x128xf32>
    %61 = arith.mulf %60, %60 : vector<8x128xf32>
    %cst_30 = arith.constant dense<0.000000e+00> : vector<8xf32>
    %62 = vector.multi_reduction <add>, %61, %cst_30 [1] : vector<8x128xf32> to vector<8xf32>
    %63 = vector.shape_cast %62 : vector<8xf32> to vector<8x1xf32>
    %cst_31 = arith.constant 1.562500e-02 : f32
    %64 = vector.broadcast %cst_31 : f32 to vector<8x1xf32>
    %65 = arith.mulf %63, %64 : vector<8x1xf32>
    %cst_32 = arith.constant 9.99999974E-6 : f32
    %66 = vector.broadcast %cst_32 : f32 to vector<8x1xf32>
    %67 = arith.addf %65, %66 : vector<8x1xf32>
    %68 = math.rsqrt %67 : vector<8x1xf32>
    %69 = vector.broadcast %68 : vector<8x1xf32> to vector<8x128xf32>
    %70 = arith.mulf %60, %69 : vector<8x128xf32>
    %71 = vector.broadcast %48 : vector<1x128xf32> to vector<8x128xf32>
    %72 = arith.mulf %70, %71 : vector<8x128xf32>
    %73 = vector.broadcast %49 : vector<1x128xf32> to vector<8x128xf32>
    %74 = arith.addf %72, %73 : vector<8x128xf32>
    %c0_33 = arith.constant 0 : index
    %c0_34 = arith.constant 0 : index
    %75 = vector.load %arg10[%c0_33, %c0_34] : memref<8x128xf32, #tpu.memory_space<vmem>>, vector<8x128xf32>
    tpu.vector_store %arg10[%c0_33, %c0_34], %74 {strides = array<i32>} : memref<8x128xf32, #tpu.memory_space<vmem>>, vector<8x128xf32>,
    return
  }
  func.func @transform_0(%arg0: i32) -> (i32, i32) {
    %c0_i32 = arith.constant 0 : i32
    %c0_i32_0 = arith.constant 0 : i32
    return %arg0, %c0_i32 : i32, i32
  }
  func.func @transform_1(%arg0: i32) -> (i32, i32) {
    %c0_i32 = arith.constant 0 : i32
    %c0_i32_0 = arith.constant 0 : i32
    %c0_i32_1 = arith.constant 0 : i32
    return %c0_i32, %c0_i32_0 : i32, i32
  }
  func.func @transform_2(%arg0: i32) -> (i32, i32) {
    %c0_i32 = arith.constant 0 : i32
    %c0_i32_0 = arith.constant 0 : i32
    %c0_i32_1 = arith.constant 0 : i32
    return %c0_i32, %c0_i32_0 : i32, i32
  }
  func.func @transform_3(%arg0: i32) -> (i32, i32) {
    %c0_i32 = arith.constant 0 : i32
    %c0_i32_0 = arith.constant 0 : i32
    %c0_i32_1 = arith.constant 0 : i32
    return %c0_i32, %c0_i32_0 : i32, i32
  }
  func.func @transform_4(%arg0: i32) -> (i32, i32) {
    %c0_i32 = arith.constant 0 : i32
    %c0_i32_0 = arith.constant 0 : i32
    %c0_i32_1 = arith.constant 0 : i32
    return %c0_i32, %c0_i32_0 : i32, i32
  }
  func.func @transform_5(%arg0: i32) -> (i32, i32) {
    %c0_i32 = arith.constant 0 : i32
    %c0_i32_0 = arith.constant 0 : i32
    %c0_i32_1 = arith.constant 0 : i32
    return %c0_i32, %c0_i32_0 : i32, i32
  }
  func.func @transform_6(%arg0: i32) -> (i32, i32) {
    %c0_i32 = arith.constant 0 : i32
    %c0_i32_0 = arith.constant 0 : i32
    %c0_i32_1 = arith.constant 0 : i32
    return %c0_i32, %c0_i32_0 : i32, i32
  }
  func.func @transform_7(%arg0: i32) -> (i32, i32) {
    %c0_i32 = arith.constant 0 : i32
    %c0_i32_0 = arith.constant 0 : i32
    %c0_i32_1 = arith.constant 0 : i32
    return %c0_i32, %c0_i32_0 : i32, i32
  }
  func.func @transform_8(%arg0: i32) -> (i32, i32) {
    %c0_i32 = arith.constant 0 : i32
    %c0_i32_0 = arith.constant 0 : i32
    %c0_i32_1 = arith.constant 0 : i32
    return %c0_i32, %c0_i32_0 : i32, i32
  }
  func.func @transform_9(%arg0: i32) -> (i32, i32) {
    %c0_i32 = arith.constant 0 : i32
    %c0_i32_0 = arith.constant 0 : i32
    return %arg0, %c0_i32 : i32, i32
  }
}

</mosaic_0001>

<llo_original>
// kernel: tpu_custom_call.1
$region0: #{tpu_custom_call.1}
  #allocation0 [shape = 'u32[]', space=smem, size = 0x4, offset = 0x4, fixed_abs, tag = 'smem constant byte address 0x4 - core index']
  #allocation1 [shape = 'u32[144,128]{1,0:T(1,128)}', space=vmem, size = 0x12000, scoped, tag = 'internal scratch']
  %s0 = inlined_call_operand.hbm [shape: f32[16,128], index: 0, kind: input, shape index: {}]
  %s1 = inlined_call_operand.vmem [shape: f32[1,128], index: 1, kind: input, shape index: {}]
  %s2 = inlined_call_operand.vmem [shape: f32[1,128], index: 2, kind: input, shape index: {}]
  %s3 = inlined_call_operand.hbm [shape: bf16[128,128], index: 3, kind: input, shape index: {}]
  %s4 = inlined_call_operand.vmem [shape: f32[1,128], index: 4, kind: input, shape index: {}]
  %s5 = inlined_call_operand.hbm [shape: bf16[128,128], index: 5, kind: input, shape index: {}]
  %s6 = inlined_call_operand.vmem [shape: f32[1,128], index: 6, kind: input, shape index: {}]
  %s7 = inlined_call_operand.vmem [shape: f32[1,128], index: 7, kind: input, shape index: {}]
  %s8 = inlined_call_operand.vmem [shape: f32[1,128], index: 8, kind: input, shape index: {}]
  %s9 = inlined_call_operand.hbm [shape: f32[16,128], index: 9, kind: output, shape index: {}]
  %s10 = sld [smem:[#allocation0]]
  $region81: #{tpu_custom_call.1} parent=0
    _
  %s12 = ssub.s32 1, %s10
  %s13 = scalar_select 0, %s12, %s10
  $region1: #{tpu_custom_call.1} parent=0
    #allocation2 [shape = 'u8[8192]{0}', space=vmem, size = 0x2000, scoped, tag = 'input window, operand 0']
    #allocation3 [shape = 's32[2]{0}', space=sflag, size = 0x8, scoped, tag = 'scoped memory for tpu_custom_call.1']
    #allocation4 [shape = 's32[2]{0}', space=sflag, size = 0x8, scoped, tag = 'scoped memory for tpu_custom_call.1']
    #allocation5 [shape = 'u8[32768]{0}', space=vmem, size = 0x8000, scoped, tag = 'input window, operand 3, single buffered']
    #allocation6 [shape = 's32[1]{0}', space=sflag, size = 0x4, scoped, tag = 'scoped memory for tpu_custom_call.1']
    #allocation7 [shape = 'u8[32768]{0}', space=vmem, size = 0x8000, scoped, tag = 'input window, operand 5, single buffered']
    #allocation8 [shape = 'u8[8192]{0}', space=vmem, size = 0x2000, scoped, tag = 'output window, operand 0']
    %14 = vsyncpa [#allocation3], 0
    %s15 = scalar_lea.sflag [#allocation3], 1
    %16 = vsyncpa %s15, 0
    %17 = vsyncpa [#allocation6], 0
    %18 = vsyncpa [#allocation4], 0
    %s19 = scalar_lea.sflag [#allocation4], 1
    %20 = vsyncpa %s19, 0
    loop: start=0, step=1, limit=4
    $region2: #{tpu_custom_call.1} parent=1 // loop_pre_header
      _
    $region3: #{tpu_custom_call.1} parent=1 // loop_header
      %s22 = sphi 0, %s26
      %p23 = scmp.ge.s32.totalorder %s22, 4
      %s32 = sphi 0, %s34
      %s35 = sphi 0, %s32
      %s36 = sphi 0, %s35
      %s52 = sphi 0, %s36
      %s56 = sphi 0, %s56
      %s58 = sphi 0, %s56
      %s59 = sphi 0, %s58
      %s73 = sphi 0, %s59
      %s77 = sphi 0, %s77
      %s79 = sphi 0, %s77
      %s80 = sphi 0, %s79
      %s94 = sphi 0, %s80
      %s98 = sphi 0, %s98
      %s100 = sphi 0, %s98
      %s101 = sphi 0, %s100
      %s115 = sphi 0, %s101
      %s119 = sphi 0, %s119
      %s121 = sphi 0, %s119
      %s122 = sphi 0, %s121
      %s136 = sphi 0, %s122
      %s140 = sphi 0, %s140
      %s142 = sphi 0, %s140
      %s143 = sphi 0, %s142
      %s157 = sphi 0, %s143
      %s161 = sphi 0, %s161
      %s163 = sphi 0, %s161
      %s164 = sphi 0, %s163
      %s178 = sphi 0, %s164
      %s182 = sphi 0, %s182
      %s184 = sphi 0, %s182
      %s185 = sphi 0, %s184
      %s199 = sphi 0, %s185
      %s203 = sphi 0, %s203
      %s205 = sphi 0, %s203
      %s206 = sphi 0, %s205
      %s220 = sphi 0, %s206
      %s226 = sphi 0, %s228
      %s229 = sphi 0, %s226
      %s230 = sphi 0, %s229
      %s246 = sphi 0, %s230
    $region4: #{tpu_custom_call.1} parent=1 // loop_header_branch
      %25 = sbr.rel (%p23) target = $region8
    $region5: #{tpu_custom_call.1} parent=1 // loop_body
      %s27 = ssub.s32 %s22, 1
      %s28 = ssub.s32 %s22, 2
      %s29 = sadd.s32 %s22, 1
      %s30 = ssub.s32 %s22, %s29
      %p31 = scmp.eq.s32.totalorder %s30, 0
      %s33 = sadd.s32 %s32, 1
      %s34 = scalar_select %p31, %s32, %s33
      %p37 = pneg %p31
      %p38 = scmp.eq.s32.totalorder %s22, 1
      %p39 = por %p37, %p38
      %p40 = scmp.ne.s32.totalorder %s32, %s35
      %p41 = scmp.eq.s32.totalorder %s22, 0
      %p42 = por %p40, %p41
      %p43 = scmp.ne.s32.totalorder %s32, %s35
      %p44 = scmp.eq.s32.totalorder %s27, 1
      %p45 = por %p43, %p44
      %p46 = scmp.ne.s32.totalorder %s35, %s36
      %p47 = scmp.eq.s32.totalorder %s27, 0
      %p48 = por %p46, %p47
      %p49 = scmp.ne.s32.totalorder %s35, %s36
      %p50 = scmp.eq.s32.totalorder %s28, 1
      %p51 = por %p49, %p50
      %p53 = scmp.ne.s32.totalorder %s36, %s52
      %p54 = scmp.eq.s32.totalorder %s28, 0
      %p55 = por %p53, %p54
      %s57 = sadd.s32 %s56, 1
      %p60 = scmp.eq.s32.totalorder %s22, 1
      %p61 = scmp.ne.s32.totalorder %s56, %s58
      %p62 = scmp.eq.s32.totalorder %s22, 0
      %p63 = por %p61, %p62
      %p64 = scmp.ne.s32.totalorder %s56, %s58
      %p65 = scmp.eq.s32.totalorder %s27, 1
      %p66 = por %p64, %p65
      %p67 = scmp.ne.s32.totalorder %s58, %s59
      %p68 = scmp.eq.s32.totalorder %s27, 0
      %p69 = por %p67, %p68
      %p70 = scmp.ne.s32.totalorder %s58, %s59
      %p71 = scmp.eq.s32.totalorder %s28, 1
      %p72 = por %p70, %p71
      %p74 = scmp.ne.s32.totalorder %s59, %s73
      %p75 = scmp.eq.s32.totalorder %s28, 0
      %p76 = por %p74, %p75
      %s78 = sadd.s32 %s77, 1
      %p81 = scmp.eq.s32.totalorder %s22, 1
      %p82 = scmp.ne.s32.totalorder %s77, %s79
      %p83 = scmp.eq.s32.totalorder %s22, 0
      %p84 = por %p82, %p83
      %p85 = scmp.ne.s32.totalorder %s77, %s79
      %p86 = scmp.eq.s32.totalorder %s27, 1
      %p87 = por %p85, %p86
      %p88 = scmp.ne.s32.totalorder %s79, %s80
      %p89 = scmp.eq.s32.totalorder %s27, 0
      %p90 = por %p88, %p89
      %p91 = scmp.ne.s32.totalorder %s79, %s80
      %p92 = scmp.eq.s32.totalorder %s28, 1
      %p93 = por %p91, %p92
      %p95 = scmp.ne.s32.totalorder %s80, %s94
      %p96 = scmp.eq.s32.totalorder %s28, 0
      %p97 = por %p95, %p96
      %s99 = sadd.s32 %s98, 1
      %p102 = scmp.eq.s32.totalorder %s22, 1
      %p103 = scmp.ne.s32.totalorder %s98, %s100
      %p104 = scmp.eq.s32.totalorder %s22, 0
      %p105 = por %p103, %p104
      %p106 = scmp.ne.s32.totalorder %s98, %s100
      %p107 = scmp.eq.s32.totalorder %s27, 1
      %p108 = por %p106, %p107
      %p109 = scmp.ne.s32.totalorder %s100, %s101
      %p110 = scmp.eq.s32.totalorder %s27, 0
      %p111 = por %p109, %p110
      %p112 = scmp.ne.s32.totalorder %s100, %s101
      %p113 = scmp.eq.s32.totalorder %s28, 1
      %p114 = por %p112, %p113
      %p116 = scmp.ne.s32.totalorder %s101, %s115
      %p117 = scmp.eq.s32.totalorder %s28, 0
      %p118 = por %p116, %p117
      %s120 = sadd.s32 %s119, 1
      %p123 = scmp.eq.s32.totalorder %s22, 1
      %p124 = scmp.ne.s32.totalorder %s119, %s121
      %p125 = scmp.eq.s32.totalorder %s22, 0
      %p126 = por %p124, %p125
      %p127 = scmp.ne.s32.totalorder %s119, %s121
      %p128 = scmp.eq.s32.totalorder %s27, 1
      %p129 = por %p127, %p128
      %p130 = scmp.ne.s32.totalorder %s121, %s122
      %p131 = scmp.eq.s32.totalorder %s27, 0
      %p132 = por %p130, %p131
      %p133 = scmp.ne.s32.totalorder %s121, %s122
      %p134 = scmp.eq.s32.totalorder %s28, 1
      %p135 = por %p133, %p134
      %p137 = scmp.ne.s32.totalorder %s122, %s136
      %p138 = scmp.eq.s32.totalorder %s28, 0
      %p139 = por %p137, %p138
      %s141 = sadd.s32 %s140, 1
      %p144 = scmp.eq.s32.totalorder %s22, 1
      %p145 = scmp.ne.s32.totalorder %s140, %s142
      %p146 = scmp.eq.s32.totalorder %s22, 0
      %p147 = por %p145, %p146
      %p148 = scmp.ne.s32.totalorder %s140, %s142
      %p149 = scmp.eq.s32.totalorder %s27, 1
      %p150 = por %p148, %p149
      %p151 = scmp.ne.s32.totalorder %s142, %s143
      %p152 = scmp.eq.s32.totalorder %s27, 0
      %p153 = por %p151, %p152
      %p154 = scmp.ne.s32.totalorder %s142, %s143
      %p155 = scmp.eq.s32.totalorder %s28, 1
      %p156 = por %p154, %p155
      %p158 = scmp.ne.s32.totalorder %s143, %s157
      %p159 = scmp.eq.s32.totalorder %s28, 0
      %p160 = por %p158, %p159
      %s162 = sadd.s32 %s161, 1
      %p165 = scmp.eq.s32.totalorder %s22, 1
      %p166 = scmp.ne.s32.totalorder %s161, %s163
      %p167 = scmp.eq.s32.totalorder %s22, 0
      %p168 = por %p166, %p167
      %p169 = scmp.ne.s32.totalorder %s161, %s163
      %p170 = scmp.eq.s32.totalorder %s27, 1
      %p171 = por %p169, %p170
      %p172 = scmp.ne.s32.totalorder %s163, %s164
      %p173 = scmp.eq.s32.totalorder %s27, 0
      %p174 = por %p172, %p173
      %p175 = scmp.ne.s32.totalorder %s163, %s164
      %p176 = scmp.eq.s32.totalorder %s28, 1
      %p177 = por %p175, %p176
      %p179 = scmp.ne.s32.totalorder %s164, %s178
      %p180 = scmp.eq.s32.totalorder %s28, 0
      %p181 = por %p179, %p180
      %s183 = sadd.s32 %s182, 1
      %p186 = scmp.eq.s32.totalorder %s22, 1
      %p187 = scmp.ne.s32.totalorder %s182, %s184
      %p188 = scmp.eq.s32.totalorder %s22, 0
      %p189 = por %p187, %p188
      %p190 = scmp.ne.s32.totalorder %s182, %s184
      %p191 = scmp.eq.s32.totalorder %s27, 1
      %p192 = por %p190, %p191
      %p193 = scmp.ne.s32.totalorder %s184, %s185
      %p194 = scmp.eq.s32.totalorder %s27, 0
      %p195 = por %p193, %p194
      %p196 = scmp.ne.s32.totalorder %s184, %s185
      %p197 = scmp.eq.s32.totalorder %s28, 1
      %p198 = por %p196, %p197
      %p200 = scmp.ne.s32.totalorder %s185, %s199
      %p201 = scmp.eq.s32.totalorder %s28, 0
      %p202 = por %p200, %p201
      %s204 = sadd.s32 %s203, 1
      %p207 = scmp.eq.s32.totalorder %s22, 1
      %p208 = scmp.ne.s32.totalorder %s203, %s205
      %p209 = scmp.eq.s32.totalorder %s22, 0
      %p210 = por %p208, %p209
      %p211 = scmp.ne.s32.totalorder %s203, %s205
      %p212 = scmp.eq.s32.totalorder %s27, 1
      %p213 = por %p211, %p212
      %p214 = scmp.ne.s32.totalorder %s205, %s206
      %p215 = scmp.eq.s32.totalorder %s27, 0
      %p216 = por %p214, %p215
      %p217 = scmp.ne.s32.totalorder %s205, %s206
      %p218 = scmp.eq.s32.totalorder %s28, 1
      %p219 = por %p217, %p218
      %p221 = scmp.ne.s32.totalorder %s206, %s220
      %p222 = scmp.eq.s32.totalorder %s28, 0
      %p223 = por %p221, %p222
      %s224 = ssub.s32 %s22, %s29
      %p225 = scmp.eq.s32.totalorder %s224, 0
      %s227 = sadd.s32 %s226, 1
      %s228 = scalar_select %p225, %s226, %s227
      %p231 = pneg %p225
      %p232 = scmp.eq.s32.totalorder %s22, 1
      %p233 = por %p231, %p232
      %p234 = scmp.ne.s32.totalorder %s226, %s229
      %p235 = scmp.eq.s32.totalorder %s22, 0
      %p236 = por %p234, %p235
      %p237 = scmp.ne.s32.totalorder %s226, %s229
      %p238 = scmp.eq.s32.totalorder %s27, 1
      %p239 = por %p237, %p238
      %p240 = scmp.ne.s32.totalorder %s229, %s230
      %p241 = scmp.eq.s32.totalorder %s27, 0
      %p242 = por %p240, %p241
      %p243 = scmp.ne.s32.totalorder %s229, %s230
      %p244 = scmp.eq.s32.totalorder %s28, 1
      %p245 = por %p243, %p244
      %p247 = scmp.ne.s32.totalorder %s230, %s246
      %p248 = scmp.eq.s32.totalorder %s28, 0
      %p249 = por %p247, %p248
      %p250 = scmp.le.s32.totalorder 1, %s22
      %p251 = scmp.lt.s32.totalorder %s22, 3
      %p252 = pnand %p250, %p251
      %p253 = pneg %p252
      // Predicated region
      $region9: #{tpu_custom_call.1} parent=5 // pred_check
        _
      $region10: #{tpu_custom_call.1} parent=5 // pred_check_branch
        %255 = sbr.rel (%p252) target = $region12
      $region11: #{tpu_custom_call.1} parent=5 // pred_region
        %s256 = ssub.s32 %s22, 1
        // Predicated region
        $region13: #{tpu_custom_call.1} parent=11 // pred_check
          %p257 = pneg %p69
        $region14: #{tpu_custom_call.1} parent=11 // pred_check_branch
          %259 = sbr.rel (%p257) target = $region16
        $region15: #{tpu_custom_call.1} parent=11 // pred_region
          _
        $region16: #{tpu_custom_call.1} parent=11 // pred_fallthru
          _
        // Predicated region
        $region17: #{tpu_custom_call.1} parent=11 // pred_check
          %p260 = pneg %p90
        $region18: #{tpu_custom_call.1} parent=11 // pred_check_branch
          %262 = sbr.rel (%p260) target = $region20
        $region19: #{tpu_custom_call.1} parent=11 // pred_region
          _
        $region20: #{tpu_custom_call.1} parent=11 // pred_fallthru
          _
        // Predicated region
        $region21: #{tpu_custom_call.1} parent=11 // pred_check
          %p263 = pneg %p111
        $region22: #{tpu_custom_call.1} parent=11 // pred_check_branch
          %265 = sbr.rel (%p263) target = $region24
        $region23: #{tpu_custom_call.1} parent=11 // pred_region
          %s267 = ssub.s32 1024, 1024
          %268 = vsyncadd [#allocation6], %s267
          %s269 = sshll.u32 [#allocation5], 4
          %s270 = int_to_ptr.vmem [resolvable:$true] %s269
          %275 = dma.hbm_to_vmem [thread:$0]  %s3, 1024, %s270, [#allocation6], 64, 64, 4
        $region24: #{tpu_custom_call.1} parent=11 // pred_fallthru
          _
        // Predicated region
        $region25: #{tpu_custom_call.1} parent=11 // pred_check
          %p276 = pneg %p132
        $region26: #{tpu_custom_call.1} parent=11 // pred_check_branch
          %278 = sbr.rel (%p276) target = $region28
        $region27: #{tpu_custom_call.1} parent=11 // pred_region
          _
        $region28: #{tpu_custom_call.1} parent=11 // pred_fallthru
          _
        // Predicated region
        $region29: #{tpu_custom_call.1} parent=11 // pred_check
          %p279 = pneg %p153
        $region30: #{tpu_custom_call.1} parent=11 // pred_check_branch
          %281 = sbr.rel (%p279) target = $region32
        $region31: #{tpu_custom_call.1} parent=11 // pred_region
          %s283 = ssub.s32 1024, 1024
          %284 = vsyncadd [#allocation6], %s283
          %s285 = sshll.u32 [#allocation7], 4
          %s286 = int_to_ptr.vmem [resolvable:$true] %s285
          %291 = dma.hbm_to_vmem [thread:$0]  %s5, 1024, %s286, [#allocation6], 64, 64, 4
        $region32: #{tpu_custom_call.1} parent=11 // pred_fallthru
          _
        // Predicated region
        $region33: #{tpu_custom_call.1} parent=11 // pred_check
          %p292 = pneg %p174
        $region34: #{tpu_custom_call.1} parent=11 // pred_check_branch
          %294 = sbr.rel (%p292) target = $region36
        $region35: #{tpu_custom_call.1} parent=11 // pred_region
          _
        $region36: #{tpu_custom_call.1} parent=11 // pred_fallthru
          _
        // Predicated region
        $region37: #{tpu_custom_call.1} parent=11 // pred_check
          %p295 = pneg %p195
        $region38: #{tpu_custom_call.1} parent=11 // pred_check_branch
          %297 = sbr.rel (%p295) target = $region40
        $region39: #{tpu_custom_call.1} parent=11 // pred_region
          _
        $region40: #{tpu_custom_call.1} parent=11 // pred_fallthru
          _
        // Predicated region
        $region41: #{tpu_custom_call.1} parent=11 // pred_check
          %p298 = pneg %p216
        $region42: #{tpu_custom_call.1} parent=11 // pred_check_branch
          %300 = sbr.rel (%p298) target = $region44
        $region43: #{tpu_custom_call.1} parent=11 // pred_region
          _
        $region44: #{tpu_custom_call.1} parent=11 // pred_fallthru
          _
      $region12: #{tpu_custom_call.1} parent=5 // pred_fallthru
        _
      %p301 = scmp.lt.s32.totalorder %s22, 2
      // Predicated region
      $region45: #{tpu_custom_call.1} parent=5 // pred_check
        %p302 = pneg %p301
      $region46: #{tpu_custom_call.1} parent=5 // pred_check_branch
        %304 = sbr.rel (%p302) target = $region48
      $region47: #{tpu_custom_call.1} parent=5 // pred_region
        // Predicated region
        $region49: #{tpu_custom_call.1} parent=47 // pred_check
          %p305 = pneg %p42
        $region50: #{tpu_custom_call.1} parent=47 // pred_check_branch
          %307 = sbr.rel (%p305) target = $region52
        $region51: #{tpu_custom_call.1} parent=47 // pred_region
          %s308 = sand.u32 %s32, 1
          %s309 = scalar_lea.sflag [#allocation3], %s308
          %s310 = sand.u32 %s32, 1
          %s311 = smul.addr %s310, 8
          %s312 = scalar_lea.vmem [#allocation2], %s311
          %s314 = ssub.s32 128, 128
          %315 = vsyncadd %s309, %s314
          %s316 = smul.addr %s22, 128
          %s317 = scalar_lea.hbm %s0, %s316
          %s319 = sshll.u32 %s312, 4
          %s320 = int_to_ptr.vmem [resolvable:$true] %s319
          %322 = dma.hbm_to_vmem [thread:$0]  %s317, 128, %s320, %s309
        $region52: #{tpu_custom_call.1} parent=47 // pred_fallthru
          _
      $region48: #{tpu_custom_call.1} parent=5 // pred_fallthru
        _
      %p323 = scmp.le.s32.totalorder 1, %s22
      %p324 = scmp.lt.s32.totalorder %s22, 3
      %p325 = pnand %p323, %p324
      %p326 = pneg %p325
      // Predicated region
      $region53: #{tpu_custom_call.1} parent=5 // pred_check
        _
      $region54: #{tpu_custom_call.1} parent=5 // pred_check_branch
        %328 = sbr.rel (%p325) target = $region56
      $region55: #{tpu_custom_call.1} parent=5 // pred_region
        %s329 = ssub.s32 %s22, 1
        %s330 = sand.u32 %s35, 1
        %s331 = scalar_lea.sflag [#allocation3], %s330
        %s332 = sand.u32 %s35, 1
        %s333 = smul.addr %s332, 8
        %s334 = scalar_lea.vmem [#allocation2], %s333
        // Predicated region
        $region57: #{tpu_custom_call.1} parent=55 // pred_check
          %p335 = pneg %p48
        $region58: #{tpu_custom_call.1} parent=55 // pred_check_branch
          %337 = sbr.rel (%p335) target = $region60
        $region59: #{tpu_custom_call.1} parent=55 // pred_region
          %338 = dma.done %s331, 128
        $region60: #{tpu_custom_call.1} parent=55 // pred_fallthru
          _
        // Predicated region
        $region61: #{tpu_custom_call.1} parent=55 // pred_check
          %p339 = pneg %p111
        $region62: #{tpu_custom_call.1} parent=55 // pred_check_branch
          %341 = sbr.rel (%p339) target = $region64
        $region63: #{tpu_custom_call.1} parent=55 // pred_region
          %342 = dma.done [#allocation6], 1024
        $region64: #{tpu_custom_call.1} parent=55 // pred_fallthru
          _
        // Predicated region
        $region65: #{tpu_custom_call.1} parent=55 // pred_check
          %p343 = pneg %p153
        $region66: #{tpu_custom_call.1} parent=55 // pred_check_branch
          %345 = sbr.rel (%p343) target = $region68
        $region67: #{tpu_custom_call.1} parent=55 // pred_region
          %346 = dma.done [#allocation6], 1024
        $region68: #{tpu_custom_call.1} parent=55 // pred_fallthru
          _
        %s347 = sand.u32 %s35, 1
        %s348 = scalar_lea.sflag [#allocation3], %s347
        %s349 = sand.u32 %s35, 1
        %s350 = smul.addr %s349, 8
        %s351 = scalar_lea.vmem [#allocation2], %s350
        %p352 = pneg %p48
        %p353 = pneg %p45
        %p354 = pneg %p69
        %p355 = pneg %p66
        %p356 = pneg %p90
        %p357 = pneg %p87
        %p358 = pneg %p111
        %p359 = pneg %p108
        %p360 = pneg %p132
        %p361 = pneg %p129
        %p362 = pneg %p153
        %p363 = pneg %p150
        %p364 = pneg %p174
        %p365 = pneg %p171
        %p366 = pneg %p195
        %p367 = pneg %p192
        %p368 = pneg %p216
        %p369 = pneg %p213
        %p370 = pneg %p242
        %p371 = pneg %p239
        %s372 = sand.u32 %s229, 1
        %s373 = scalar_lea.sflag [#allocation4], %s372
        %s374 = sand.u32 %s229, 1
        %s375 = smul.addr %s374, 8
        %s376 = scalar_lea.vmem [#allocation8], %s375
        %v378 = vld [vmem:[%s334] sm:$0xff]
        %v379 = vld [vmem:[%s1] sm:$0x1]
        %v380 = vld [vmem:[%s2] sm:$0x1]
        %381 = vadd.xlane.f32.xlu0 %v378
        %v382 = vpop.xlane.xlu0 %381
        %v383 = vmul.f32 %v382, 0.03125
        %v384 = vsub.f32 %v378, %v383
        %v385 = vlaneseq
        %v386 = vand.u32 %v385, 127
        %vm387 = vcmp.lt.s32.totalorder %v386, 32
        %v388 = vsel %vm387, %v384, 0.0
        %v389 = vmul.f32 %v388, %v388
        %390 = vadd.xlane.f32.xlu0 %v389
        %v391 = vpop.xlane.xlu0 %390
        %v392 = vmul.f32 %v391, 0.03125
        %v393 = vadd.f32 %v392, 1e-05
        %v394 = vrsqrt.pop %v393
        %v395 = vmul.f32 %v388, %v394
        %v397 = vlaneseq
        %v398 = vshrl.u32 %v397, 7
        %v399 = vsub.s32 0, %v398
        %v400 = vrot.slane %v379, %v399
        %v402 = vmul.f32 %v395, %v400
        %v404 = vlaneseq
        %v405 = vshrl.u32 %v404, 7
        %v406 = vsub.s32 0, %v405
        %v407 = vrot.slane %v380, %v406
        %v409 = vadd.f32 %v402, %v407
        %v410 = vpack.c.bf16 %v409, %v409
        %v411 = vld [vmem:[#allocation5] sm:$0xf]
        %v412 = vld [vmem:[#allocation5 + $0x4] sm:$0xf]
        %v413 = vld [vmem:[#allocation5 + $0x8] sm:$0xf]
        %v414 = vld [vmem:[#allocation5 + $0xc] sm:$0xf]
        %v415 = vld [vmem:[#allocation5 + $0x10] sm:$0xf]
        %v416 = vld [vmem:[#allocation5 + $0x14] sm:$0xf]
        %v417 = vld [vmem:[#allocation5 + $0x18] sm:$0xf]
        %v418 = vld [vmem:[#allocation5 + $0x1c] sm:$0xf]
        %v419 = vld [vmem:[#allocation5 + $0x20] sm:$0xf]
        %v420 = vld [vmem:[#allocation5 + $0x24] sm:$0xf]
        %v421 = vld [vmem:[#allocation5 + $0x28] sm:$0xf]
        %v422 = vld [vmem:[#allocation5 + $0x2c] sm:$0xf]
        %v423 = vld [vmem:[#allocation5 + $0x30] sm:$0xf]
        %v424 = vld [vmem:[#allocation5 + $0x34] sm:$0xf]
        %v425 = vld [vmem:[#allocation5 + $0x38] sm:$0xf]
        %v426 = vld [vmem:[#allocation5 + $0x3c] sm:$0xf]
        %v427 = vld [vmem:[%s4] sm:$0x1]
        %v429 = vlaneseq
        %v430 = vshrl.u32 %v429, 7
        %v431 = vsub.s32 0, %v430
        %v432 = vrot.slane %v427, %v431
        %v450 = vunpack.c.l.b16 %v411
        %v451 = vunpack.c.l.b16 %v412
        %v452 = vunpack.c.l.b16 %v413
        %v453 = vunpack.c.l.b16 %v414
        %v454 = vunpack.c.l.b16 %v415
        %v455 = vunpack.c.l.b16 %v416
        %v456 = vunpack.c.l.b16 %v417
        %v457 = vunpack.c.l.b16 %v418
        %v458 = vunpack.c.l.b16 %v419
        %v459 = vunpack.c.l.b16 %v420
        %v460 = vunpack.c.l.b16 %v421
        %v461 = vunpack.c.l.b16 %v422
        %v462 = vunpack.c.l.b16 %v423
        %v463 = vunpack.c.l.b16 %v424
        %v464 = vunpack.c.l.b16 %v425
        %v465 = vunpack.c.l.b16 %v426
        %v466 = vpack.c.b16 %v451, %v450
        %v467 = vpack.c.b16 %v453, %v452
        %v468 = vpack.c.b16 %v455, %v454
        %v469 = vpack.c.b16 %v457, %v456
        %v470 = vpack.c.b16 %v459, %v458
        %v471 = vpack.c.b16 %v461, %v460
        %v472 = vpack.c.b16 %v463, %v462
        %v473 = vpack.c.b16 %v465, %v464
        %482 = vmatprep.subr.bf16.mxu0 0
        %483 = vmatpush1.bf16.msra.mxu0 %v466
        %484 = vmatprep.subr.bf16.mxu0 0
        %485 = vmatpush1.bf16.msra.mxu0 %v467
        %486 = vmatprep.subr.bf16.mxu0 0
        %487 = vmatpush1.bf16.msra.mxu0 %v468
        %488 = vmatprep.subr.bf16.mxu0 0
        %489 = vmatpush1.bf16.msra.mxu0 %v469
        %490 = vmatprep.subr.bf16.mxu0 0
        %491 = vmatpush1.bf16.msra.mxu0 %v470
        %492 = vmatprep.subr.bf16.mxu0 0
        %493 = vmatpush1.bf16.msra.mxu0 %v471
        %494 = vmatprep.subr.bf16.mxu0 0
        %495 = vmatpush1.bf16.msra.mxu0 %v472
        %496 = vmatprep.subr.bf16.mxu0 0
        %497 = vmatpush1.bf16.msra.mxu0 %v473
        %498 = vmatprep.subr.bf16.mxu0 0
        %499 = vmatpush1.bf16.msra.mxu0 0
        %500 = vmatprep.subr.bf16.mxu0 0
        %501 = vmatpush1.bf16.msra.mxu0 0
        %502 = vmatprep.subr.bf16.mxu0 0
        %503 = vmatpush1.bf16.msra.mxu0 0
        %504 = vmatprep.subr.bf16.mxu0 0
        %505 = vmatpush1.bf16.msra.mxu0 0
        %506 = vmatprep.subr.bf16.mxu0 0
        %507 = vmatpush1.bf16.msra.mxu0 0
        %508 = vmatprep.subr.bf16.mxu0 0
        %509 = vmatpush1.bf16.msra.mxu0 0
        %510 = vmatprep.subr.bf16.mxu0 0
        %511 = vmatpush1.bf16.msra.mxu0 0
        %512 = vmatprep.subr.bf16.mxu0 0
        %513 = vmatpush1.bf16.msra.mxu0 0
        %514 = vmatprep.mubr.bf16.mxu0 0
        %515 = vmatmul.mubr.bf16.gmra.mrb[0].mxu0 %v410
        %v516 = vpop.f32.mrb[0].mxu0
        %v517 = vadd.f32 %v432, %v516
        %v518 = vpop.f32.mrb[0].mxu0
        %v519 = vpop.f32.mrb[0].mxu0
        %v520 = vpop.f32.mrb[0].mxu0
        %521 = vdwg.mxu0
        %v522 = vmul.f32 %v517, 0.5
        %v523 = vmul.f32 %v517, 0.70710677
        %v524 = verf.f32.pop %v523
        %v525 = vadd.f32 %v524, 1.0
        %v526 = vmul.f32 %v522, %v525
        %v527 = vpack.c.bf16 %v526, %v526
        %v528 = vld [vmem:[#allocation7] sm:$0xf]
        %v529 = vld [vmem:[#allocation7 + $0x4] sm:$0xf]
        %v530 = vld [vmem:[#allocation7 + $0x8] sm:$0xf]
        %v531 = vld [vmem:[#allocation7 + $0xc] sm:$0xf]
        %v532 = vld [vmem:[#allocation7 + $0x10] sm:$0xf]
        %v533 = vld [vmem:[#allocation7 + $0x14] sm:$0xf]
        %v534 = vld [vmem:[#allocation7 + $0x18] sm:$0xf]
        %v535 = vld [vmem:[#allocation7 + $0x1c] sm:$0xf]
        %v536 = vld [vmem:[#allocation7 + $0x20] sm:$0xf]
        %v537 = vld [vmem:[#allocation7 + $0x24] sm:$0xf]
        %v538 = vld [vmem:[#allocation7 + $0x28] sm:$0xf]
        %v539 = vld [vmem:[#allocation7 + $0x2c] sm:$0xf]
        %v540 = vld [vmem:[#allocation7 + $0x30] sm:$0xf]
        %v541 = vld [vmem:[#allocation7 + $0x34] sm:$0xf]
        %v542 = vld [vmem:[#allocation7 + $0x38] sm:$0xf]
        %v543 = vld [vmem:[#allocation7 + $0x3c] sm:$0xf]
        %v544 = vld [vmem:[%s6] sm:$0x1]
        %v546 = vlaneseq
        %v547 = vshrl.u32 %v546, 7
        %v548 = vsub.s32 0, %v547
        %v549 = vrot.slane %v544, %v548
        %v567 = vunpack.c.l.b16 %v528
        %v568 = vunpack.c.l.b16 %v529
        %v569 = vunpack.c.l.b16 %v530
        %v570 = vunpack.c.l.b16 %v531
        %v571 = vunpack.c.l.b16 %v532
        %v572 = vunpack.c.l.b16 %v533
        %v573 = vunpack.c.l.b16 %v534
        %v574 = vunpack.c.l.b16 %v535
        %v575 = vunpack.c.l.b16 %v536
        %v576 = vunpack.c.l.b16 %v537
        %v577 = vunpack.c.l.b16 %v538
        %v578 = vunpack.c.l.b16 %v539
        %v579 = vunpack.c.l.b16 %v540
        %v580 = vunpack.c.l.b16 %v541
        %v581 = vunpack.c.l.b16 %v542
        %v582 = vunpack.c.l.b16 %v543
        %v583 = vpack.c.b16 %v568, %v567
        %v584 = vpack.c.b16 %v570, %v569
        %v585 = vpack.c.b16 %v572, %v571
        %v586 = vpack.c.b16 %v574, %v573
        %v587 = vpack.c.b16 %v576, %v575
        %v588 = vpack.c.b16 %v578, %v577
        %v589 = vpack.c.b16 %v580, %v579
        %v590 = vpack.c.b16 %v582, %v581
        %599 = vmatprep.subr.bf16.mxu0 0
        %600 = vmatpush1.bf16.msra.mxu0 %v583
        %601 = vmatprep.subr.bf16.mxu0 0
        %602 = vmatpush1.bf16.msra.mxu0 %v584
        %603 = vmatprep.subr.bf16.mxu0 0
        %604 = vmatpush1.bf16.msra.mxu0 %v585
        %605 = vmatprep.subr.bf16.mxu0 0
        %606 = vmatpush1.bf16.msra.mxu0 %v586
        %607 = vmatprep.subr.bf16.mxu0 0
        %608 = vmatpush1.bf16.msra.mxu0 %v587
        %609 = vmatprep.subr.bf16.mxu0 0
        %610 = vmatpush1.bf16.msra.mxu0 %v588
        %611 = vmatprep.subr.bf16.mxu0 0
        %612 = vmatpush1.bf16.msra.mxu0 %v589
        %613 = vmatprep.subr.bf16.mxu0 0
        %614 = vmatpush1.bf16.msra.mxu0 %v590
        %615 = vmatprep.subr.bf16.mxu0 0
        %616 = vmatpush1.bf16.msra.mxu0 0
        %617 = vmatprep.subr.bf16.mxu0 0
        %618 = vmatpush1.bf16.msra.mxu0 0
        %619 = vmatprep.subr.bf16.mxu0 0
        %620 = vmatpush1.bf16.msra.mxu0 0
        %621 = vmatprep.subr.bf16.mxu0 0
        %622 = vmatpush1.bf16.msra.mxu0 0
        %623 = vmatprep.subr.bf16.mxu0 0
        %624 = vmatpush1.bf16.msra.mxu0 0
        %625 = vmatprep.subr.bf16.mxu0 0
        %626 = vmatpush1.bf16.msra.mxu0 0
        %627 = vmatprep.subr.bf16.mxu0 0
        %628 = vmatpush1.bf16.msra.mxu0 0
        %629 = vmatprep.subr.bf16.mxu0 0
        %630 = vmatpush1.bf16.msra.mxu0 0
        %631 = vmatprep.mubr.bf16.mxu0 0
        %632 = vmatmul.mubr.bf16.gmra.mrb[0].mxu0 %v527
        %v633 = vpop.f32.mrb[0].mxu0
        %v634 = vadd.f32 %v549, %v633
        %v635 = vpop.f32.mrb[0].mxu0
        %v636 = vpop.f32.mrb[0].mxu0
        %v637 = vpop.f32.mrb[0].mxu0
        %638 = vdwg.mxu0
        %v639 = vld [vmem:[%s7] sm:$0x1]
        %v640 = vld [vmem:[%s8] sm:$0x1]
        %641 = vadd.xlane.f32.xlu0 %v634
        %v642 = vpop.xlane.xlu0 %641
        %v643 = vmul.f32 %v642, 0.015625
        %v644 = vsub.f32 %v634, %v643
        %vm645 = vcmp.lt.s32.totalorder %v386, 64
        %v646 = vsel %vm645, %v644, 0.0
        %v647 = vmul.f32 %v646, %v646
        %648 = vadd.xlane.f32.xlu0 %v647
        %v649 = vpop.xlane.xlu0 %648
        %v650 = vmul.f32 %v649, 0.015625
        %v651 = vadd.f32 %v650, 1e-05
        %v652 = vrsqrt.pop %v651
        %v653 = vmul.f32 %v646, %v652
        %v655 = vlaneseq
        %v656 = vshrl.u32 %v655, 7
        %v657 = vsub.s32 0, %v656
        %v658 = vrot.slane %v639, %v657
        %v660 = vmul.f32 %v653, %v658
        %v662 = vlaneseq
        %v663 = vshrl.u32 %v662, 7
        %v664 = vsub.s32 0, %v663
        %v665 = vrot.slane %v640, %v664
        %v667 = vadd.f32 %v660, %v665
        %668 = vst [vmem:[%s376] sm:$0xff] %v667
        %s669 = sand.u32 %s229, 1
        %s670 = scalar_lea.sflag [#allocation4], %s669
        %s671 = sand.u32 %s229, 1
        %s672 = smul.addr %s671, 8
        %s673 = scalar_lea.vmem [#allocation8], %s672
        // Predicated region
        $region69: #{tpu_custom_call.1} parent=55 // pred_check
          %p674 = pneg %p239
        $region70: #{tpu_custom_call.1} parent=55 // pred_check_branch
          %676 = sbr.rel (%p674) target = $region72
        $region71: #{tpu_custom_call.1} parent=55 // pred_region
          %s678 = ssub.s32 128, 128
          %679 = vsyncadd %s670, %s678
          %s680 = smul.addr %s27, 128
          %s681 = scalar_lea.hbm %s9, %s680
          %s683 = sshll.u32 %s673, 4
          %s684 = int_to_ptr.vmem [resolvable:$true] %s683
          %686 = dma.vmem_to_hbm [thread:$0]  %s684, 128, %s681, %s670
        $region72: #{tpu_custom_call.1} parent=55 // pred_fallthru
          _
      $region56: #{tpu_custom_call.1} parent=5 // pred_fallthru
        _
      %p687 = scmp.le.s32.totalorder 2, %s22
      // Predicated region
      $region73: #{tpu_custom_call.1} parent=5 // pred_check
        %p688 = pneg %p687
      $region74: #{tpu_custom_call.1} parent=5 // pred_check_branch
        %690 = sbr.rel (%p688) target = $region76
      $region75: #{tpu_custom_call.1} parent=5 // pred_region
        %s691 = ssub.s32 %s22, 2
        // Predicated region
        $region77: #{tpu_custom_call.1} parent=75 // pred_check
          %p692 = pneg %p245
        $region78: #{tpu_custom_call.1} parent=75 // pred_check_branch
          %694 = sbr.rel (%p692) target = $region80
        $region79: #{tpu_custom_call.1} parent=75 // pred_region
          %s695 = sand.u32 %s230, 1
          %s696 = scalar_lea.sflag [#allocation4], %s695
          %s697 = sand.u32 %s230, 1
          %s698 = smul.addr %s697, 8
          %s699 = scalar_lea.vmem [#allocation8], %s698
          %700 = dma.done %s696, 128
        $region80: #{tpu_custom_call.1} parent=75 // pred_fallthru
          _
      $region76: #{tpu_custom_call.1} parent=5 // pred_fallthru
        _
    $region6: #{tpu_custom_call.1} parent=1 // loop_footer
      %s26 = sadd.s32 1, %s22
    $region7: #{tpu_custom_call.1} parent=1 // loop_footer_branch
      %21 = sbr.rel target = $region3
    $region8: #{tpu_custom_call.1} parent=1 // loop_exit
      _
    %701 = vsyncpa [#allocation3], 1
    %s702 = scalar_lea.sflag [#allocation3], 1
    %703 = vsyncpa %s702, 1
    %704 = vsyncpa [#allocation6], 1
    %705 = vsyncpa [#allocation4], 1
    %s706 = scalar_lea.sflag [#allocation4], 1
    %707 = vsyncpa %s706, 1

</llo_original>
